<compile_context>
chip_gen: v7x
topology: tpu7x:2x2x1
jax: 0.10.0
libtpu: 0.0.40
codegen_flags: <defaults>
</compile_context>

<pallas_src>
import jax
import jax.numpy as jnp
from jax.experimental import pallas as pl
from jax.experimental.pallas import tpu as pltpu


FEAT = 1000        # backbone feature width (torch classifier convention)
HID = 64           # fc1 out features
HID_PAD = 128      # fc1 out padded to a full lane group
OUT = 10           # fc2 out features
SLAB = 128         # packed output slab width


def _round_up(x, m):
    return ((x + m - 1) // m) * m


# ----------------------------------------------------------------------------
# Pallas kernel: (folded backbone-linear+fc1) + ReLU + fc2, lane-dense output
# ----------------------------------------------------------------------------
def premodel_head_kernel(pooled_ref, wf_ref, bf_ref, w2_ref, b2_ref, out_ref):
    # pooled_ref: (tb, Cp)    f32 pooled backbone input, cols >= C zero
    # wf_ref    : (Cp, 128)   bf16 folded (backbone-linear @ fc1) weight;
    #                         rows >= C and cols >= 64 zero
    # bf_ref    : (1, 128)    f32 folded bias; lanes >= 64 zero
    # w2_ref    : (128, 128)  bf16 fc2.T placed at [0:64, 64:74], zero elsewhere
    # b2_ref    : (1, 128)    f32 fc2 bias at lanes [64:74], zero elsewhere
    # out_ref   : (tb, 128)   f32: lanes [0:64]=x1, [64:74]=x2, rest 0
    pooled = pooled_ref[...].astype(wf_ref.dtype)        # bf16 MXU operand
    h = jnp.maximum(
        jnp.dot(pooled, wf_ref[...], preferred_element_type=jnp.float32)
        + bf_ref[...], 0.0)                               # (tb,128); lanes>=64 are 0
    y = jnp.dot(h.astype(w2_ref.dtype), w2_ref[...],
                preferred_element_type=jnp.float32)       # x2 lands in lanes [64:74]
    # h carries x1 in lanes [0:64] (zeros elsewhere); y carries x2 in lanes
    # [64:74] (zeros elsewhere) -> single unmasked 128-lane store.
    out_ref[...] = (h + y + b2_ref[...]).astype(out_ref.dtype)


# ----------------------------------------------------------------------------
# One-time parameter prep (hoisted out of the per-call path)
# ----------------------------------------------------------------------------
def prepare_premodel_params(params, *, weight_dtype=jnp.bfloat16):
    """Fold backbone-linear into fc1 and pack/pad weights for the kernel.

    NOTE: the backbone-linear/fc1 fold is mathematically exact only because the
    stand-in backbone ends in a plain linear layer with no nonlinearity between
    it and fc1.  If the real backbone applies an activation after its final
    linear, keep the unfolded two-matmul structure instead.
    """
    f32 = jnp.float32
    C = params["wb"].shape[1]
    Cp = _round_up(C, 128)

    wb_T = params["wb"].T.astype(f32)                     # (C, 1000)
    w1_T = params["w1"].T.astype(f32)                     # (1000, 64)
    Wf = wb_T @ w1_T                                      # (C, 64), f32 accumulate
    bf = params["bb"].astype(f32) @ w1_T + params["b1"].astype(f32)   # (64,)

    wf = jnp.zeros((Cp, HID_PAD), f32).at[:C, :HID].set(Wf).astype(weight_dtype)
    bf_p = jnp.zeros((1, HID_PAD), f32).at[0, :HID].set(bf)
    w2 = (jnp.zeros((HID_PAD, HID_PAD), f32)
          .at[:HID, HID:HID + OUT].set(params["w2"].T.astype(f32))
          .astype(weight_dtype))
    b2 = jnp.zeros((1, HID_PAD), f32).at[0, HID:HID + OUT].set(
        params["b2"].astype(f32))
    return dict(wf=wf, bf=bf_p, w2=w2, b2=b2)


# ----------------------------------------------------------------------------
# Wrapper: batch grid (>=2 points for megacore), weights VMEM-resident
# ----------------------------------------------------------------------------
def premodel_head(pooled, prepped, *, tb=512):
    B, C = pooled.shape
    Cp = prepped["wf"].shape[0]

    Bp = _round_up(B, 8)
    if Bp >= 16:
        # Keep at least 2 grid points so the "parallel" batch axis can shard
        # across v7x's two TensorCores (neutral on single-TC v5e/v6e).
        tb = min(tb, max(8, _round_up(pl.cdiv(Bp, 2), 8)))
    else:
        tb = Bp                      # toy batch: single 8-row tile
    Bp = _round_up(Bp, tb)
    if (Bp != B) or (Cp != C):
        pooled = jnp.pad(pooled, ((0, Bp - B), (0, Cp - C)))

    row = lambda i: (i, 0)
    rep = lambda i: (0, 0)           # weights: same block every step -> stay in VMEM

    # VMEM budget: double-buffered pooled/out tiles + (double-buffered) weights
    # + biases, plus headroom; capped well below v7x's 64 MiB physical VMEM.
    wbytes = (prepped["wf"].size * prepped["wf"].dtype.itemsize
              + prepped["w2"].size * prepped["w2"].dtype.itemsize
              + 2 * SLAB * 4)
    working_set = 2 * (tb * Cp * 4 + tb * SLAB * 4 + wbytes)
    vmem_limit = int(min(32 << 20, max(8 << 20, 2 * working_set + (2 << 20))))

    slab = pl.pallas_call(
        premodel_head_kernel,
        out_shape=jax.ShapeDtypeStruct((Bp, SLAB), jnp.float32),
        grid_spec=pl.GridSpec(
            grid=(Bp // tb,),
            in_specs=[
                pl.BlockSpec((tb, Cp), row),
                pl.BlockSpec(prepped["wf"].shape, rep),
                pl.BlockSpec(prepped["bf"].shape, rep),
                pl.BlockSpec(prepped["w2"].shape, rep),
                pl.BlockSpec(prepped["b2"].shape, rep),
            ],
            out_specs=pl.BlockSpec((tb, SLAB), row),
        ),
        compiler_params=pltpu.CompilerParams(
            dimension_semantics=("parallel",),
            vmem_limit_bytes=vmem_limit,
        ),
    )(pooled, prepped["wf"], prepped["bf"], prepped["w2"], prepped["b2"])

    x1 = slab[:B, :HID]
    x2 = slab[:B, HID:HID + OUT]
    return x2, x1


def premodel_forward(x_nchw, prepped):
    # TODO(synk): the real backbone is an arbitrary external nn.Module; the
    # stand-in here is global-avg-pool (plain JAX reduction) followed by a
    # linear to 1000 logits, with that linear algebraically folded into fc1
    # inside the Pallas head kernel.  The torch .squeeze() of the (B,1000,1,1)
    # feature tensor is folded away by working on the pooled (B, C) tensor.
    pooled = jnp.mean(x_nchw, axis=(2, 3))                # (B, C)
    return premodel_head(pooled, prepped)


# ----------------------------------------------------------------------------
# Main
# ----------------------------------------------------------------------------
if __name__ == "__main__":
    key = jax.random.PRNGKey(0)
    kx, kwb, kbb, kw1, kb1, kw2, kb2 = jax.random.split(key, 7)

    B, C, H, W = 2, 4, 16, 16
    x = jax.random.normal(kx, (B, C, H, W), dtype=jnp.float32)

    params = {
        # synthetic backbone linear: C -> 1000
        "wb": jax.random.normal(kwb, (FEAT, C), dtype=jnp.float32) * 0.1,
        "bb": jax.random.normal(kbb, (FEAT,), dtype=jnp.float32) * 0.1,
        # fc1: 1000 -> 64 (PyTorch Linear weight layout: (out, in))
        "w1": jax.random.normal(kw1, (HID, FEAT), dtype=jnp.float32) * 0.03,
        "b1": jax.random.normal(kb1, (HID,), dtype=jnp.float32) * 0.03,
        # fc2: 64 -> 10
        "w2": jax.random.normal(kw2, (OUT, HID), dtype=jnp.float32) * 0.1,
        "b2": jax.random.normal(kb2, (OUT,), dtype=jnp.float32) * 0.1,
    }

    prepped = prepare_premodel_params(params)             # one-time weight prep
    x2, x1 = premodel_forward(x, prepped)
    jax.block_until_ready((x2, x1))

    # Cross-check against a plain f32 JAX reference (same math as the PyTorch
    # module).  Tolerances account for bf16 weight storage (f32 accumulation).
    pooled_ref = jnp.mean(x, axis=(2, 3))
    feats_ref = pooled_ref @ params["wb"].T + params["bb"]
    x1_ref = jnp.maximum(feats_ref @ params["w1"].T + params["b1"], 0.0)
    x2_ref = x1_ref @ params["w2"].T + params["b2"]

    assert x1.shape == (B, HID) and x2.shape == (B, OUT)
    assert jnp.allclose(x1, x1_ref, atol=1e-2, rtol=1e-2)
    assert jnp.allclose(x2, x2_ref, atol=1e-2, rtol=1e-2)

    print("KERNEL_OK")
</pallas_src>

<mosaic_0001>
module attributes {stable_mosaic.version = 11 : i64} {
  func.func @premodel_head_kernel(%arg0: i32, %arg1: memref<8x128xf32, #tpu.memory_space<vmem>>, %arg2: memref<128x128xbf16, #tpu.memory_space<vmem>>, %arg3: memref<1x128xf32, #tpu.memory_space<vmem>>, %arg4: memref<128x128xbf16, #tpu.memory_space<vmem>>, %arg5: memref<1x128xf32, #tpu.memory_space<vmem>>, %arg6: memref<8x128xf32, #tpu.memory_space<vmem>>) attributes {dimension_semantics = [#tpu.dimension_semantics<parallel>], iteration_bounds = array<i64: 1>, scalar_prefetch = 0 : i64, scratch_operands = 0 : i64, tpu.core_type = #tpu.core_type<tc>, window_params = [{transform_indices = @transform_0, window_bounds = array<i64: 8, 128>}, {pipeline_mode = #tpu.pipeline_mode<synchronous>, transform_indices = @transform_1, window_bounds = array<i64: 128, 128>}, {pipeline_mode = #tpu.pipeline_mode<synchronous>, transform_indices = @transform_2, window_bounds = array<i64: 1, 128>}, {pipeline_mode = #tpu.pipeline_mode<synchronous>, transform_indices = @transform_3, window_bounds = array<i64: 128, 128>}, {pipeline_mode = #tpu.pipeline_mode<synchronous>, transform_indices = @transform_4, window_bounds = array<i64: 1, 128>}, {transform_indices = @transform_5, window_bounds = array<i64: 8, 128>}]} {
    %c0 = arith.constant 0 : index
    %c0_0 = arith.constant 0 : index
    %0 = vector.load %arg1[%c0, %c0_0] : memref<8x128xf32, #tpu.memory_space<vmem>>, vector<8x128xf32>
    %1 = arith.truncf %0 : vector<8x128xf32> to vector<8x128xbf16>
    %c0_1 = arith.constant 0 : index
    %c0_2 = arith.constant 0 : index
    %2 = vector.load %arg2[%c0_1, %c0_2] : memref<128x128xbf16, #tpu.memory_space<vmem>>, vector<128x128xbf16>
    %cst = arith.constant dense<0.000000e+00> : vector<8x128xf32>
    %3 = tpu.matmul %1, %2, %cst {dimension_numbers = #tpu.dot_dimension_numbers<[1], [0], [0], [1], [0, 0, 1, 1], [], []>} : vector<8x128xbf16>, vector<128x128xbf16>, vector<8x128xf32> -> vector<8x128xf32>
    %c0_3 = arith.constant 0 : index
    %c0_4 = arith.constant 0 : index
    %4 = vector.load %arg3[%c0_3, %c0_4] : memref<1x128xf32, #tpu.memory_space<vmem>>, vector<1x128xf32>
    %5 = vector.broadcast %4 : vector<1x128xf32> to vector<8x128xf32>
    %6 = arith.addf %3, %5 : vector<8x128xf32>
    %cst_5 = arith.constant 0.000000e+00 : f32
    %7 = vector.broadcast %cst_5 : f32 to vector<8x128xf32>
    %8 = arith.maximumf %6, %7 : vector<8x128xf32>
    %9 = arith.truncf %8 : vector<8x128xf32> to vector<8x128xbf16>
    %c0_6 = arith.constant 0 : index
    %c0_7 = arith.constant 0 : index
    %10 = vector.load %arg4[%c0_6, %c0_7] : memref<128x128xbf16, #tpu.memory_space<vmem>>, vector<128x128xbf16>
    %cst_8 = arith.constant dense<0.000000e+00> : vector<8x128xf32>
    %11 = tpu.matmul %9, %10, %cst_8 {dimension_numbers = #tpu.dot_dimension_numbers<[1], [0], [0], [1], [0, 0, 1, 1], [], []>} : vector<8x128xbf16>, vector<128x128xbf16>, vector<8x128xf32> -> vector<8x128xf32>
    %12 = arith.addf %8, %11 : vector<8x128xf32>
    %c0_9 = arith.constant 0 : index
    %c0_10 = arith.constant 0 : index
    %13 = vector.load %arg5[%c0_9, %c0_10] : memref<1x128xf32, #tpu.memory_space<vmem>>, vector<1x128xf32>
    %14 = vector.broadcast %13 : vector<1x128xf32> to vector<8x128xf32>
    %15 = arith.addf %12, %14 : vector<8x128xf32>
    %c0_11 = arith.constant 0 : index
    %c0_12 = arith.constant 0 : index
    %16 = vector.load %arg6[%c0_11, %c0_12] : memref<8x128xf32, #tpu.memory_space<vmem>>, vector<8x128xf32>
    tpu.vector_store %arg6[%c0_11, %c0_12], %15 {strides = array<i32>} : memref<8x128xf32, #tpu.memory_space<vmem>>, vector<8x128xf32>,
    return
  }
  func.func @transform_0(%arg0: i32) -> (i32, i32) {
    %c0_i32 = arith.constant 0 : i32
    %c0_i32_0 = arith.constant 0 : i32
    return %arg0, %c0_i32 : i32, i32
  }
  func.func @transform_1(%arg0: i32) -> (i32, i32) {
    %c0_i32 = arith.constant 0 : i32
    %c0_i32_0 = arith.constant 0 : i32
    %c0_i32_1 = arith.constant 0 : i32
    return %c0_i32, %c0_i32_0 : i32, i32
  }
  func.func @transform_2(%arg0: i32) -> (i32, i32) {
    %c0_i32 = arith.constant 0 : i32
    %c0_i32_0 = arith.constant 0 : i32
    %c0_i32_1 = arith.constant 0 : i32
    return %c0_i32, %c0_i32_0 : i32, i32
  }
  func.func @transform_3(%arg0: i32) -> (i32, i32) {
    %c0_i32 = arith.constant 0 : i32
    %c0_i32_0 = arith.constant 0 : i32
    %c0_i32_1 = arith.constant 0 : i32
    return %c0_i32, %c0_i32_0 : i32, i32
  }
  func.func @transform_4(%arg0: i32) -> (i32, i32) {
    %c0_i32 = arith.constant 0 : i32
    %c0_i32_0 = arith.constant 0 : i32
    %c0_i32_1 = arith.constant 0 : i32
    return %c0_i32, %c0_i32_0 : i32, i32
  }
  func.func @transform_5(%arg0: i32) -> (i32, i32) {
    %c0_i32 = arith.constant 0 : i32
    %c0_i32_0 = arith.constant 0 : i32
    return %arg0, %c0_i32 : i32, i32
  }
}

</mosaic_0001>

<llo_original>
// kernel: tpu_custom_call.1
$region0: #{tpu_custom_call.1}
  #allocation0 [shape = 'u32[]', space=smem, size = 0x4, offset = 0x4, fixed_abs, tag = 'smem constant byte address 0x4 - core index']
  #allocation1 [shape = 'u32[144,128]{1,0:T(1,128)}', space=vmem, size = 0x12000, scoped, tag = 'internal scratch']
  %s0 = inlined_call_operand.hbm [shape: f32[8,128], index: 0, kind: input, shape index: {}]
  %s1 = inlined_call_operand.hbm [shape: bf16[128,128], index: 1, kind: input, shape index: {}]
  %s2 = inlined_call_operand.vmem [shape: f32[1,128], index: 2, kind: input, shape index: {}]
  %s3 = inlined_call_operand.hbm [shape: bf16[128,128], index: 3, kind: input, shape index: {}]
  %s4 = inlined_call_operand.vmem [shape: f32[1,128], index: 4, kind: input, shape index: {}]
  %s5 = inlined_call_operand.hbm [shape: f32[8,128], index: 5, kind: output, shape index: {}]
  %s6 = sld [smem:[#allocation0]]
  $region42: #{tpu_custom_call.1} parent=0
    _
  %s8 = ssub.s32 1, %s6
  %s9 = scalar_select 0, %s8, %s6
  $region1: #{tpu_custom_call.1} parent=0
    #allocation2 [shape = 'u8[4096]{0}', space=vmem, size = 0x1000, scoped, tag = 'input window, operand 0, single buffered']
    #allocation3 [shape = 's32[1]{0}', space=sflag, size = 0x4, scoped, tag = 'scoped memory for tpu_custom_call.1']
    #allocation4 [shape = 's32[1]{0}', space=sflag, size = 0x4, scoped, tag = 'scoped memory for tpu_custom_call.1']
    #allocation5 [shape = 'u8[32768]{0}', space=vmem, size = 0x8000, scoped, tag = 'input window, operand 1, single buffered']
    #allocation6 [shape = 's32[1]{0}', space=sflag, size = 0x4, scoped, tag = 'scoped memory for tpu_custom_call.1']
    #allocation7 [shape = 'u8[32768]{0}', space=vmem, size = 0x8000, scoped, tag = 'input window, operand 3, single buffered']
    #allocation8 [shape = 'u8[4096]{0}', space=vmem, size = 0x1000, scoped, tag = 'output window, operand 0, single buffered']
    %10 = vsyncpa [#allocation3], 0
    %11 = vsyncpa [#allocation6], 0
    %12 = vsyncpa [#allocation4], 0
    // Predicated region
    $region2: #{tpu_custom_call.1} parent=1 // pred_check
      _
    $region3: #{tpu_custom_call.1} parent=1 // pred_check_branch
      %14 = sbr.rel (0) target = $region5
    $region4: #{tpu_custom_call.1} parent=1 // pred_region
      %s16 = ssub.s32 128, 128
      %17 = vsyncadd [#allocation3], %s16
      %s19 = sshll.u32 [#allocation2], 4
      %s20 = int_to_ptr.vmem [resolvable:$true] %s19
      %22 = dma.hbm_to_vmem [thread:$0]  %s0, 128, %s20, [#allocation3]
    $region5: #{tpu_custom_call.1} parent=1 // pred_fallthru
      _
    // Predicated region
    $region6: #{tpu_custom_call.1} parent=1 // pred_check
      _
    $region7: #{tpu_custom_call.1} parent=1 // pred_check_branch
      %24 = sbr.rel (0) target = $region9
    $region8: #{tpu_custom_call.1} parent=1 // pred_region
      %s26 = ssub.s32 1024, 1024
      %27 = vsyncadd [#allocation6], %s26
      %s28 = sshll.u32 [#allocation5], 4
      %s29 = int_to_ptr.vmem [resolvable:$true] %s28
      %34 = dma.hbm_to_vmem [thread:$0]  %s1, 1024, %s29, [#allocation6], 64, 64, 4
    $region9: #{tpu_custom_call.1} parent=1 // pred_fallthru
      _
    // Predicated region
    $region10: #{tpu_custom_call.1} parent=1 // pred_check
      _
    $region11: #{tpu_custom_call.1} parent=1 // pred_check_branch
      %36 = sbr.rel (0) target = $region13
    $region12: #{tpu_custom_call.1} parent=1 // pred_region
      _
    $region13: #{tpu_custom_call.1} parent=1 // pred_fallthru
      _
    // Predicated region
    $region14: #{tpu_custom_call.1} parent=1 // pred_check
      _
    $region15: #{tpu_custom_call.1} parent=1 // pred_check_branch
      %38 = sbr.rel (0) target = $region17
    $region16: #{tpu_custom_call.1} parent=1 // pred_region
      %s40 = ssub.s32 1024, 1024
      %41 = vsyncadd [#allocation6], %s40
      %s42 = sshll.u32 [#allocation7], 4
      %s43 = int_to_ptr.vmem [resolvable:$true] %s42
      %48 = dma.hbm_to_vmem [thread:$0]  %s3, 1024, %s43, [#allocation6], 64, 64, 4
    $region17: #{tpu_custom_call.1} parent=1 // pred_fallthru
      _
    // Predicated region
    $region18: #{tpu_custom_call.1} parent=1 // pred_check
      _
    $region19: #{tpu_custom_call.1} parent=1 // pred_check_branch
      %50 = sbr.rel (0) target = $region21
    $region20: #{tpu_custom_call.1} parent=1 // pred_region
      _
    $region21: #{tpu_custom_call.1} parent=1 // pred_fallthru
      _
    // Predicated region
    $region22: #{tpu_custom_call.1} parent=1 // pred_check
      _
    $region23: #{tpu_custom_call.1} parent=1 // pred_check_branch
      %52 = sbr.rel (0) target = $region25
    $region24: #{tpu_custom_call.1} parent=1 // pred_region
      %53 = dma.done [#allocation3], 128
    $region25: #{tpu_custom_call.1} parent=1 // pred_fallthru
      _
    // Predicated region
    $region26: #{tpu_custom_call.1} parent=1 // pred_check
      _
    $region27: #{tpu_custom_call.1} parent=1 // pred_check_branch
      %55 = sbr.rel (0) target = $region29
    $region28: #{tpu_custom_call.1} parent=1 // pred_region
      %56 = dma.done [#allocation6], 1024
    $region29: #{tpu_custom_call.1} parent=1 // pred_fallthru
      _
    // Predicated region
    $region30: #{tpu_custom_call.1} parent=1 // pred_check
      _
    $region31: #{tpu_custom_call.1} parent=1 // pred_check_branch
      %58 = sbr.rel (0) target = $region33
    $region32: #{tpu_custom_call.1} parent=1 // pred_region
      %59 = dma.done [#allocation6], 1024
    $region33: #{tpu_custom_call.1} parent=1 // pred_fallthru
      _
    %v61 = vld [vmem:[#allocation2] sm:$0xff]
    %v62 = vpack.c.bf16 %v61, %v61
    %v63 = vld [vmem:[#allocation5] sm:$0xf]
    %v64 = vld [vmem:[#allocation5 + $0x4] sm:$0xf]
    %v65 = vld [vmem:[#allocation5 + $0x8] sm:$0xf]
    %v66 = vld [vmem:[#allocation5 + $0xc] sm:$0xf]
    %v67 = vld [vmem:[#allocation5 + $0x10] sm:$0xf]
    %v68 = vld [vmem:[#allocation5 + $0x14] sm:$0xf]
    %v69 = vld [vmem:[#allocation5 + $0x18] sm:$0xf]
    %v70 = vld [vmem:[#allocation5 + $0x1c] sm:$0xf]
    %v71 = vld [vmem:[#allocation5 + $0x20] sm:$0xf]
    %v72 = vld [vmem:[#allocation5 + $0x24] sm:$0xf]
    %v73 = vld [vmem:[#allocation5 + $0x28] sm:$0xf]
    %v74 = vld [vmem:[#allocation5 + $0x2c] sm:$0xf]
    %v75 = vld [vmem:[#allocation5 + $0x30] sm:$0xf]
    %v76 = vld [vmem:[#allocation5 + $0x34] sm:$0xf]
    %v77 = vld [vmem:[#allocation5 + $0x38] sm:$0xf]
    %v78 = vld [vmem:[#allocation5 + $0x3c] sm:$0xf]
    %v79 = vld [vmem:[%s2] sm:$0x1]
    %v81 = vlaneseq
    %v82 = vshrl.u32 %v81, 7
    %v83 = vsub.s32 0, %v82
    %v84 = vrot.slane %v79, %v83
    %v102 = vunpack.c.l.b16 %v63
    %v103 = vunpack.c.l.b16 %v64
    %v104 = vunpack.c.l.b16 %v65
    %v105 = vunpack.c.l.b16 %v66
    %v106 = vunpack.c.l.b16 %v67
    %v107 = vunpack.c.l.b16 %v68
    %v108 = vunpack.c.l.b16 %v69
    %v109 = vunpack.c.l.b16 %v70
    %v110 = vunpack.c.l.b16 %v71
    %v111 = vunpack.c.l.b16 %v72
    %v112 = vunpack.c.l.b16 %v73
    %v113 = vunpack.c.l.b16 %v74
    %v114 = vunpack.c.l.b16 %v75
    %v115 = vunpack.c.l.b16 %v76
    %v116 = vunpack.c.l.b16 %v77
    %v117 = vunpack.c.l.b16 %v78
    %v118 = vpack.c.b16 %v103, %v102
    %v119 = vpack.c.b16 %v105, %v104
    %v120 = vpack.c.b16 %v107, %v106
    %v121 = vpack.c.b16 %v109, %v108
    %v122 = vpack.c.b16 %v111, %v110
    %v123 = vpack.c.b16 %v113, %v112
    %v124 = vpack.c.b16 %v115, %v114
    %v125 = vpack.c.b16 %v117, %v116
    %134 = vmatprep.subr.bf16.mxu0 0
    %135 = vmatpush1.bf16.msra.mxu0 %v118
    %136 = vmatprep.subr.bf16.mxu0 0
    %137 = vmatpush1.bf16.msra.mxu0 %v119
    %138 = vmatprep.subr.bf16.mxu0 0
    %139 = vmatpush1.bf16.msra.mxu0 %v120
    %140 = vmatprep.subr.bf16.mxu0 0
    %141 = vmatpush1.bf16.msra.mxu0 %v121
    %142 = vmatprep.subr.bf16.mxu0 0
    %143 = vmatpush1.bf16.msra.mxu0 %v122
    %144 = vmatprep.subr.bf16.mxu0 0
    %145 = vmatpush1.bf16.msra.mxu0 %v123
    %146 = vmatprep.subr.bf16.mxu0 0
    %147 = vmatpush1.bf16.msra.mxu0 %v124
    %148 = vmatprep.subr.bf16.mxu0 0
    %149 = vmatpush1.bf16.msra.mxu0 %v125
    %150 = vmatprep.subr.bf16.mxu0 0
    %151 = vmatpush1.bf16.msra.mxu0 0
    %152 = vmatprep.subr.bf16.mxu0 0
    %153 = vmatpush1.bf16.msra.mxu0 0
    %154 = vmatprep.subr.bf16.mxu0 0
    %155 = vmatpush1.bf16.msra.mxu0 0
    %156 = vmatprep.subr.bf16.mxu0 0
    %157 = vmatpush1.bf16.msra.mxu0 0
    %158 = vmatprep.subr.bf16.mxu0 0
    %159 = vmatpush1.bf16.msra.mxu0 0
    %160 = vmatprep.subr.bf16.mxu0 0
    %161 = vmatpush1.bf16.msra.mxu0 0
    %162 = vmatprep.subr.bf16.mxu0 0
    %163 = vmatpush1.bf16.msra.mxu0 0
    %164 = vmatprep.subr.bf16.mxu0 0
    %165 = vmatpush1.bf16.msra.mxu0 0
    %166 = vmatprep.mubr.bf16.mxu0 0
    %167 = vmatmul.mubr.bf16.gmra.mrb[0].mxu0 %v62
    %v168 = vpop.f32.mrb[0].mxu0
    %v169 = vadd.f32 %v84, %v168
    %v170 = vpop.f32.mrb[0].mxu0
    %v171 = vpop.f32.mrb[0].mxu0
    %v172 = vpop.f32.mrb[0].mxu0
    %173 = vdwg.mxu0
    %v174 = vmax.f32 %v169, 0.0
    %v175 = vpack.c.bf16 %v174, %v174
    %v176 = vld [vmem:[#allocation7] sm:$0xf]
    %v177 = vld [vmem:[#allocation7 + $0x4] sm:$0xf]
    %v178 = vld [vmem:[#allocation7 + $0x8] sm:$0xf]
    %v179 = vld [vmem:[#allocation7 + $0xc] sm:$0xf]
    %v180 = vld [vmem:[#allocation7 + $0x10] sm:$0xf]
    %v181 = vld [vmem:[#allocation7 + $0x14] sm:$0xf]
    %v182 = vld [vmem:[#allocation7 + $0x18] sm:$0xf]
    %v183 = vld [vmem:[#allocation7 + $0x1c] sm:$0xf]
    %v184 = vld [vmem:[#allocation7 + $0x20] sm:$0xf]
    %v185 = vld [vmem:[#allocation7 + $0x24] sm:$0xf]
    %v186 = vld [vmem:[#allocation7 + $0x28] sm:$0xf]
    %v187 = vld [vmem:[#allocation7 + $0x2c] sm:$0xf]
    %v188 = vld [vmem:[#allocation7 + $0x30] sm:$0xf]
    %v189 = vld [vmem:[#allocation7 + $0x34] sm:$0xf]
    %v190 = vld [vmem:[#allocation7 + $0x38] sm:$0xf]
    %v191 = vld [vmem:[#allocation7 + $0x3c] sm:$0xf]
    %v208 = vunpack.c.l.b16 %v176
    %v209 = vunpack.c.l.b16 %v177
    %v210 = vunpack.c.l.b16 %v178
    %v211 = vunpack.c.l.b16 %v179
    %v212 = vunpack.c.l.b16 %v180
    %v213 = vunpack.c.l.b16 %v181
    %v214 = vunpack.c.l.b16 %v182
    %v215 = vunpack.c.l.b16 %v183
    %v216 = vunpack.c.l.b16 %v184
    %v217 = vunpack.c.l.b16 %v185
    %v218 = vunpack.c.l.b16 %v186
    %v219 = vunpack.c.l.b16 %v187
    %v220 = vunpack.c.l.b16 %v188
    %v221 = vunpack.c.l.b16 %v189
    %v222 = vunpack.c.l.b16 %v190
    %v223 = vunpack.c.l.b16 %v191
    %v224 = vpack.c.b16 %v209, %v208
    %v225 = vpack.c.b16 %v211, %v210
    %v226 = vpack.c.b16 %v213, %v212
    %v227 = vpack.c.b16 %v215, %v214
    %v228 = vpack.c.b16 %v217, %v216
    %v229 = vpack.c.b16 %v219, %v218
    %v230 = vpack.c.b16 %v221, %v220
    %v231 = vpack.c.b16 %v223, %v222
    %240 = vmatprep.subr.bf16.mxu0 0
    %241 = vmatpush1.bf16.msra.mxu0 %v224
    %242 = vmatprep.subr.bf16.mxu0 0
    %243 = vmatpush1.bf16.msra.mxu0 %v225
    %244 = vmatprep.subr.bf16.mxu0 0
    %245 = vmatpush1.bf16.msra.mxu0 %v226
    %246 = vmatprep.subr.bf16.mxu0 0
    %247 = vmatpush1.bf16.msra.mxu0 %v227
    %248 = vmatprep.subr.bf16.mxu0 0
    %249 = vmatpush1.bf16.msra.mxu0 %v228
    %250 = vmatprep.subr.bf16.mxu0 0
    %251 = vmatpush1.bf16.msra.mxu0 %v229
    %252 = vmatprep.subr.bf16.mxu0 0
    %253 = vmatpush1.bf16.msra.mxu0 %v230
    %254 = vmatprep.subr.bf16.mxu0 0
    %255 = vmatpush1.bf16.msra.mxu0 %v231
    %256 = vmatprep.subr.bf16.mxu0 0
    %257 = vmatpush1.bf16.msra.mxu0 0
    %258 = vmatprep.subr.bf16.mxu0 0
    %259 = vmatpush1.bf16.msra.mxu0 0
    %260 = vmatprep.subr.bf16.mxu0 0
    %261 = vmatpush1.bf16.msra.mxu0 0
    %262 = vmatprep.subr.bf16.mxu0 0
    %263 = vmatpush1.bf16.msra.mxu0 0
    %264 = vmatprep.subr.bf16.mxu0 0
    %265 = vmatpush1.bf16.msra.mxu0 0
    %266 = vmatprep.subr.bf16.mxu0 0
    %267 = vmatpush1.bf16.msra.mxu0 0
    %268 = vmatprep.subr.bf16.mxu0 0
    %269 = vmatpush1.bf16.msra.mxu0 0
    %270 = vmatprep.subr.bf16.mxu0 0
    %271 = vmatpush1.bf16.msra.mxu0 0
    %272 = vmatprep.mubr.bf16.mxu0 0
    %273 = vmatmul.mubr.bf16.gmra.mrb[0].mxu0 %v175
    %v274 = vpop.f32.mrb[0].mxu0
    %v275 = vadd.f32 0.0, %v274
    %v276 = vpop.f32.mrb[0].mxu0
    %v277 = vpop.f32.mrb[0].mxu0
    %v278 = vpop.f32.mrb[0].mxu0
    %279 = vdwg.mxu0
    %v280 = vadd.f32 %v174, %v275
    %v281 = vld [vmem:[%s4] sm:$0x1]
    %v283 = vlaneseq
    %v284 = vshrl.u32 %v283, 7
    %v285 = vsub.s32 0, %v284
    %v286 = vrot.slane %v281, %v285
    %v288 = vadd.f32 %v280, %v286
    %289 = vst [vmem:[#allocation8] sm:$0xff] %v288
    // Predicated region
    $region34: #{tpu_custom_call.1} parent=1 // pred_check
      _
    $region35: #{tpu_custom_call.1} parent=1 // pred_check_branch
      %291 = sbr.rel (0) target = $region37
    $region36: #{tpu_custom_call.1} parent=1 // pred_region
      %s293 = ssub.s32 128, 128
      %294 = vsyncadd [#allocation4], %s293
      %s296 = sshll.u32 [#allocation8], 4
      %s297 = int_to_ptr.vmem [resolvable:$true] %s296
      %299 = dma.vmem_to_hbm [thread:$0]  %s297, 128, %s5, [#allocation4]
    $region37: #{tpu_custom_call.1} parent=1 // pred_fallthru
      _
    // Predicated region
    $region38: #{tpu_custom_call.1} parent=1 // pred_check
      _
    $region39: #{tpu_custom_call.1} parent=1 // pred_check_branch
      %301 = sbr.rel (0) target = $region41
    $region40: #{tpu_custom_call.1} parent=1 // pred_region
      %302 = dma.done [#allocation4], 128
    $region41: #{tpu_custom_call.1} parent=1 // pred_fallthru
      _
    %303 = vsyncpa [#allocation3], 1
    %304 = vsyncpa [#allocation6], 1
    %305 = vsyncpa [#allocation4], 1

</llo_original>
